<compile_context>
chip_gen: v5e
topology: v5e:2x2
jax: 0.10.0
libtpu: 0.0.40
codegen_flags: <defaults>
</compile_context>

<pallas_src>
import jax
import jax.numpy as jnp
from jax.experimental import pallas as pl
from jax.experimental.pallas import tpu as pltpu

NEG_SLOPE = 2.9759177
C_IN = 35
C_OUT = 2


def _round_up(x, m):
    return ((x + m - 1) // m) * m


def _largest_divisor_leq(n, cap):
    """Largest divisor of n that is <= cap (keeps the batch grid exact)."""
    cap = max(1, min(n, cap))
    for d in range(cap, 0, -1):
        if n % d == 0:
            return d
    return 1


def conv1x1_leaky_kernel(x_ref, w_ref, b_ref, o_ref):
    # x_ref: (BN, C_IN, THW)   w_ref: (C_OUT, C_IN)   b_ref: (C_OUT, 1)
    # o_ref: (BN, C_OUT, THW)
    y = jnp.einsum(
        "oc,nct->not", w_ref[...], x_ref[...], preferred_element_type=jnp.float32
    )
    y = y + b_ref[...]  # (C_OUT, 1) broadcasts over (BN, C_OUT, THW)
    # v4 = where(v1 > 0, v1, v1 * negative_slope)
    o_ref[...] = jnp.where(y > 0, y, y * NEG_SLOPE).astype(o_ref.dtype)


def conv1x1_leaky(x_nchw, weight, bias, *, max_tile=65536, vmem_limit_bytes=48 << 20):
    """x_nchw: (N, C_IN, H, W) f32; weight: (C_OUT, C_IN) f32; bias: (C_OUT,) f32."""
    n, c, h, w = x_nchw.shape
    assert c == C_IN
    hw = h * w

    # Free reshape: NCHW is already contiguous as (N, C, H*W).
    x3d = x_nchw.reshape(n, c, hw)

    # Lane-dense spatial tile: multiple of 128, capped at 65536 lanes so the
    # double-buffered input slab (~18.4 MiB) stays comfortable on v7x's 64 MiB
    # VMEM while still being "one big contiguous DMA" on v5e/v6e.
    thw = min(max_tile, _round_up(hw, 128))

    # For small spatial extents, batch several images per grid step so a step
    # moves MB-scale data instead of tens of KB (0.35 us/step overhead).
    bn = 1
    if thw <= 4096 and n > 1:
        budget_bytes = 4 << 20  # ~4 MiB of input per step
        bn = _largest_divisor_leq(n, max(1, budget_bytes // (C_IN * thw * 4)))

    n_blocks = pl.cdiv(n, bn)
    j_blocks = pl.cdiv(hw, thw)

    # v7x shards parallel grid axes across its two TensorCores: expose >= 2
    # grid steps whenever possible.
    if n_blocks * j_blocks == 1:
        if n > 1:
            bn = 1
            n_blocks = n
        elif hw > 128:
            thw = _round_up((hw + 1) // 2, 128)
            j_blocks = pl.cdiv(hw, thw)

    w_mat = weight.astype(jnp.float32)                   # (C_OUT, C_IN)
    b_mat = bias.reshape(C_OUT, 1).astype(jnp.float32)   # (C_OUT, 1)

    grid = (n_blocks, j_blocks)
    out3d = pl.pallas_call(
        conv1x1_leaky_kernel,
        out_shape=jax.ShapeDtypeStruct((n, C_OUT, hw), jnp.float32),
        grid_spec=pltpu.PrefetchScalarGridSpec(
            num_scalar_prefetch=0,
            grid=grid,
            in_specs=[
                pl.BlockSpec((bn, C_IN, thw), lambda i, j: (i, 0, j)),
                pl.BlockSpec((C_OUT, C_IN), lambda i, j: (0, 0)),
                pl.BlockSpec((C_OUT, 1), lambda i, j: (0, 0)),
            ],
            out_specs=pl.BlockSpec((bn, C_OUT, thw), lambda i, j: (i, 0, j)),
        ),
        compiler_params=pltpu.CompilerParams(
            dimension_semantics=("parallel", "parallel"),
            vmem_limit_bytes=vmem_limit_bytes,
        ),
    )(x3d, w_mat, b_mat)

    # Free reshape back to NCHW — no padding was ever materialized.
    return out3d.reshape(n, C_OUT, h, w)


def reference(x_nchw, weight, bias):
    # Pure-JAX reference for the same forward pass.
    y = jnp.einsum("nchw,oc->nohw", x_nchw, weight) + bias[None, :, None, None]
    return jnp.where(y > 0, y, y * NEG_SLOPE)


if __name__ == "__main__":
    key = jax.random.PRNGKey(0)
    kx, kw, kb, kx2 = jax.random.split(key, 4)

    # Deterministic "Kaiming-ish" init for the 1x1 conv weight/bias.
    fan_in = float(C_IN)
    weight = jax.random.normal(kw, (C_OUT, C_IN), dtype=jnp.float32) / jnp.sqrt(fan_in)
    bias = jax.random.normal(kb, (C_OUT,), dtype=jnp.float32) * 0.1

    # Test 1: small shape consistent with Conv2d(35, 2, 1): N=2, H=W=16.
    x = jax.random.normal(kx, (2, C_IN, 16, 16), dtype=jnp.float32)
    out = conv1x1_leaky(x, weight, bias)
    jax.block_until_ready(out)
    ref = reference(x, weight, bias)
    assert out.shape == (2, C_OUT, 16, 16)
    assert jnp.allclose(out, ref, atol=1e-5, rtol=1e-5)

    # Test 2: ragged spatial size (H*W = 143, not a multiple of 128) to
    # exercise the masked last spatial block (no host pad / slice anywhere).
    x2 = jax.random.normal(kx2, (2, C_IN, 13, 11), dtype=jnp.float32)
    out2 = conv1x1_leaky(x2, weight, bias)
    jax.block_until_ready(out2)
    ref2 = reference(x2, weight, bias)
    assert out2.shape == (2, C_OUT, 13, 11)
    assert jnp.allclose(out2, ref2, atol=1e-5, rtol=1e-5)

    print("KERNEL_OK")
</pallas_src>

<mosaic_0001>
module attributes {stable_mosaic.version = 11 : i64} {
  func.func @conv1x1_leaky_kernel(%arg0: i32, %arg1: i32, %arg2: memref<1x35x256xf32, #tpu.memory_space<vmem>>, %arg3: memref<2x35xf32, #tpu.memory_space<vmem>>, %arg4: memref<2x1xf32, #tpu.memory_space<vmem>>, %arg5: memref<1x2x256xf32, #tpu.memory_space<vmem>>) attributes {dimension_semantics = [#tpu.dimension_semantics<parallel>, #tpu.dimension_semantics<parallel>], iteration_bounds = array<i64: 2, 1>, scalar_prefetch = 0 : i64, scratch_operands = 0 : i64, tpu.core_type = #tpu.core_type<tc>, window_params = [{transform_indices = @transform_0, window_bounds = array<i64: 1, 35, 256>}, {pipeline_mode = #tpu.pipeline_mode<synchronous>, transform_indices = @transform_1, window_bounds = array<i64: 2, 35>}, {pipeline_mode = #tpu.pipeline_mode<synchronous>, transform_indices = @transform_2, window_bounds = array<i64: 2, 1>}, {transform_indices = @transform_3, window_bounds = array<i64: 1, 2, 256>}]} {
    %c0 = arith.constant 0 : index
    %c0_0 = arith.constant 0 : index
    %0 = vector.load %arg3[%c0, %c0_0] : memref<2x35xf32, #tpu.memory_space<vmem>>, vector<2x35xf32>
    %c0_1 = arith.constant 0 : index
    %c0_2 = arith.constant 0 : index
    %c0_3 = arith.constant 0 : index
    %1 = vector.load %arg2[%c0_1, %c0_2, %c0_3] : memref<1x35x256xf32, #tpu.memory_space<vmem>>, vector<1x35x256xf32>
    "tpu.trace_start"() <{level = 10 : i32, message = "oc,nct->not"}> : () -> ()
    %cst = arith.constant dense<0.000000e+00> : vector<1x256x2xf32>
    %2 = tpu.matmul %1, %0, %cst {dimension_numbers = #tpu.dot_dimension_numbers<[1], [1], [0, 2], [0], [0, 0, 0, 2, 1, 0], [], []>} : vector<1x35x256xf32>, vector<2x35xf32>, vector<1x256x2xf32> -> vector<1x256x2xf32>
    %3 = tpu.transpose %2, [0, 2, 1] : vector<1x256x2xf32> -> vector<1x2x256xf32>
    "tpu.trace_stop"() : () -> ()
    %c0_4 = arith.constant 0 : index
    %c0_5 = arith.constant 0 : index
    %4 = vector.load %arg4[%c0_4, %c0_5] : memref<2x1xf32, #tpu.memory_space<vmem>>, vector<2x1xf32>
    %5 = vector.shape_cast %4 : vector<2x1xf32> to vector<1x2x1xf32>
    %6 = vector.broadcast %5 : vector<1x2x1xf32> to vector<1x2x256xf32>
    %7 = arith.addf %3, %6 : vector<1x2x256xf32>
    %cst_6 = arith.constant 0.000000e+00 : f32
    %8 = vector.broadcast %cst_6 : f32 to vector<1x2x256xf32>
    %9 = arith.cmpf ogt, %7, %8 : vector<1x2x256xf32>
    %cst_7 = arith.constant 2.97591782 : f32
    %10 = vector.broadcast %cst_7 : f32 to vector<1x2x256xf32>
    %11 = arith.mulf %7, %10 : vector<1x2x256xf32>
    %12 = arith.select %9, %7, %11 : vector<1x2x256xi1>, vector<1x2x256xf32>
    %c0_8 = arith.constant 0 : index
    %c0_9 = arith.constant 0 : index
    %c0_10 = arith.constant 0 : index
    %13 = vector.load %arg5[%c0_8, %c0_9, %c0_10] : memref<1x2x256xf32, #tpu.memory_space<vmem>>, vector<1x2x256xf32>
    tpu.vector_store %arg5[%c0_8, %c0_9, %c0_10], %12 {strides = array<i32>} : memref<1x2x256xf32, #tpu.memory_space<vmem>>, vector<1x2x256xf32>,
    return
  }
  func.func @transform_0(%arg0: i32, %arg1: i32) -> (i32, i32, i32) {
    %c0_i32 = arith.constant 0 : i32
    %c0_i32_0 = arith.constant 0 : i32
    return %arg0, %c0_i32, %arg1 : i32, i32, i32
  }
  func.func @transform_1(%arg0: i32, %arg1: i32) -> (i32, i32) {
    %c0_i32 = arith.constant 0 : i32
    %c0_i32_0 = arith.constant 0 : i32
    %c0_i32_1 = arith.constant 0 : i32
    return %c0_i32, %c0_i32_0 : i32, i32
  }
  func.func @transform_2(%arg0: i32, %arg1: i32) -> (i32, i32) {
    %c0_i32 = arith.constant 0 : i32
    %c0_i32_0 = arith.constant 0 : i32
    %c0_i32_1 = arith.constant 0 : i32
    return %c0_i32, %c0_i32_0 : i32, i32
  }
  func.func @transform_3(%arg0: i32, %arg1: i32) -> (i32, i32, i32) {
    %c0_i32 = arith.constant 0 : i32
    %c0_i32_0 = arith.constant 0 : i32
    return %arg0, %c0_i32, %arg1 : i32, i32, i32
  }
}

</mosaic_0001>

<llo_original>
// kernel: tpu_custom_call.1
$region0: #{tpu_custom_call.1}
  #allocation0 [shape = 'u32[]', space=smem, size = 0x4, offset = 0x4, fixed_abs, tag = 'smem constant byte address 0x4 - core index']
  #allocation1 [shape = 'u32[72,128]{1,0:T(1,128)}', space=vmem, size = 0x9000, scoped, tag = 'internal scratch']
  %s0 = inlined_call_operand.vmem [shape: f32[2,35,256], index: 0, kind: input, shape index: {}]
  %s1 = inlined_call_operand.vmem [shape: f32[2,35], index: 1, kind: input, shape index: {}]
  %s2 = inlined_call_operand.vmem [shape: f32[2,1], index: 2, kind: input, shape index: {}]
  %s3 = inlined_call_operand.hbm [shape: f32[2,2,256], index: 3, kind: output, shape index: {}]
  %s4 = sld [smem:[#allocation0]]
  $region45: #{tpu_custom_call.1} parent=0
    _
  %s6 = ssub.s32 1, %s4
  %s7 = scalar_select 0, %s6, %s4
  $region1: #{tpu_custom_call.1} parent=0
    #allocation2 [shape = 'u8[4096]{0}', space=vmem, size = 0x1000, scoped, tag = 'output window, operand 0']
    #allocation3 [shape = 's32[2]{0}', space=sflag, size = 0x8, scoped, tag = 'scoped memory for tpu_custom_call.1']
    %8 = vsyncpa [#allocation3], 0
    %s9 = scalar_lea.sflag [#allocation3], 1
    %10 = vsyncpa %s9, 0
    loop: start=0, step=1, limit=4
    $region2: #{tpu_custom_call.1} parent=1 // loop_pre_header
      _
    $region3: #{tpu_custom_call.1} parent=1 // loop_header
      %s12 = sphi 0, %s16
      %p13 = scmp.ge.s32.totalorder %s12, 4
      %s19 = sphi 0, %s31
      %s20 = sphi 0, %s27
      %s21 = sphi 0, %s19
      %s22 = sphi 0, %s20
      %s23 = sphi 0, %s21
      %s24 = sphi 0, %s22
      %s36 = sphi 0, %s38
      %s39 = sphi 0, %s36
      %s40 = sphi 0, %s39
      %s56 = sphi 0, %s40
      %s60 = sphi 0, %s60
      %s62 = sphi 0, %s60
      %s63 = sphi 0, %s62
      %s77 = sphi 0, %s63
      %s81 = sphi 0, %s81
      %s83 = sphi 0, %s81
      %s84 = sphi 0, %s83
      %s98 = sphi 0, %s84
      %s106 = sphi 0, %s108
      %s109 = sphi 0, %s106
      %s110 = sphi 0, %s109
      %s126 = sphi 0, %s110
    $region4: #{tpu_custom_call.1} parent=1 // loop_header_branch
      %15 = sbr.rel (%p13) target = $region8
    $region5: #{tpu_custom_call.1} parent=1 // loop_body
      %s17 = ssub.s32 %s12, 1
      %s18 = ssub.s32 %s12, 2
      %s25 = sadd.s32 1, %s20
      %p26 = scmp.ge.s32.totalorder %s25, 1
      %s27 = scalar_select %p26, 0, %s25
      %s28 = sadd.s32 1, %s19
      %s29 = scalar_select %p26, %s28, %s19
      %p30 = scmp.ge.s32.totalorder %s29, 2
      %s31 = scalar_select %p30, 0, %s29
      %s32 = ssub.s32 %s19, %s31
      %s33 = ssub.s32 %s20, %s27
      %s34 = sor.u32 %s32, %s33
      %p35 = scmp.eq.s32.totalorder %s34, 0
      %s37 = sadd.s32 %s36, 1
      %s38 = scalar_select %p35, %s36, %s37
      %p41 = pneg %p35
      %p42 = scmp.eq.s32.totalorder %s12, 1
      %p43 = por %p41, %p42
      %p44 = scmp.ne.s32.totalorder %s36, %s39
      %p45 = scmp.eq.s32.totalorder %s12, 0
      %p46 = por %p44, %p45
      %p47 = scmp.ne.s32.totalorder %s36, %s39
      %p48 = scmp.eq.s32.totalorder %s17, 1
      %p49 = por %p47, %p48
      %p50 = scmp.ne.s32.totalorder %s39, %s40
      %p51 = scmp.eq.s32.totalorder %s17, 0
      %p52 = por %p50, %p51
      %p53 = scmp.ne.s32.totalorder %s39, %s40
      %p54 = scmp.eq.s32.totalorder %s18, 1
      %p55 = por %p53, %p54
      %p57 = scmp.ne.s32.totalorder %s40, %s56
      %p58 = scmp.eq.s32.totalorder %s18, 0
      %p59 = por %p57, %p58
      %s61 = sadd.s32 %s60, 1
      %p64 = scmp.eq.s32.totalorder %s12, 1
      %p65 = scmp.ne.s32.totalorder %s60, %s62
      %p66 = scmp.eq.s32.totalorder %s12, 0
      %p67 = por %p65, %p66
      %p68 = scmp.ne.s32.totalorder %s60, %s62
      %p69 = scmp.eq.s32.totalorder %s17, 1
      %p70 = por %p68, %p69
      %p71 = scmp.ne.s32.totalorder %s62, %s63
      %p72 = scmp.eq.s32.totalorder %s17, 0
      %p73 = por %p71, %p72
      %p74 = scmp.ne.s32.totalorder %s62, %s63
      %p75 = scmp.eq.s32.totalorder %s18, 1
      %p76 = por %p74, %p75
      %p78 = scmp.ne.s32.totalorder %s63, %s77
      %p79 = scmp.eq.s32.totalorder %s18, 0
      %p80 = por %p78, %p79
      %s82 = sadd.s32 %s81, 1
      %p85 = scmp.eq.s32.totalorder %s12, 1
      %p86 = scmp.ne.s32.totalorder %s81, %s83
      %p87 = scmp.eq.s32.totalorder %s12, 0
      %p88 = por %p86, %p87
      %p89 = scmp.ne.s32.totalorder %s81, %s83
      %p90 = scmp.eq.s32.totalorder %s17, 1
      %p91 = por %p89, %p90
      %p92 = scmp.ne.s32.totalorder %s83, %s84
      %p93 = scmp.eq.s32.totalorder %s17, 0
      %p94 = por %p92, %p93
      %p95 = scmp.ne.s32.totalorder %s83, %s84
      %p96 = scmp.eq.s32.totalorder %s18, 1
      %p97 = por %p95, %p96
      %p99 = scmp.ne.s32.totalorder %s84, %s98
      %p100 = scmp.eq.s32.totalorder %s18, 0
      %p101 = por %p99, %p100
      %s102 = ssub.s32 %s19, %s31
      %s103 = ssub.s32 %s20, %s27
      %s104 = sor.u32 %s102, %s103
      %p105 = scmp.eq.s32.totalorder %s104, 0
      %s107 = sadd.s32 %s106, 1
      %s108 = scalar_select %p105, %s106, %s107
      %p111 = pneg %p105
      %p112 = scmp.eq.s32.totalorder %s12, 1
      %p113 = por %p111, %p112
      %p114 = scmp.ne.s32.totalorder %s106, %s109
      %p115 = scmp.eq.s32.totalorder %s12, 0
      %p116 = por %p114, %p115
      %p117 = scmp.ne.s32.totalorder %s106, %s109
      %p118 = scmp.eq.s32.totalorder %s17, 1
      %p119 = por %p117, %p118
      %p120 = scmp.ne.s32.totalorder %s109, %s110
      %p121 = scmp.eq.s32.totalorder %s17, 0
      %p122 = por %p120, %p121
      %p123 = scmp.ne.s32.totalorder %s109, %s110
      %p124 = scmp.eq.s32.totalorder %s18, 1
      %p125 = por %p123, %p124
      %p127 = scmp.ne.s32.totalorder %s110, %s126
      %p128 = scmp.eq.s32.totalorder %s18, 0
      %p129 = por %p127, %p128
      %p130 = scmp.le.s32.totalorder 1, %s12
      %p131 = scmp.lt.s32.totalorder %s12, 3
      %p132 = pnand %p130, %p131
      %p133 = pneg %p132
      // Predicated region
      $region9: #{tpu_custom_call.1} parent=5 // pred_check
        _
      $region10: #{tpu_custom_call.1} parent=5 // pred_check_branch
        %135 = sbr.rel (%p132) target = $region12
      $region11: #{tpu_custom_call.1} parent=5 // pred_region
        %s136 = ssub.s32 %s12, 1
        // Predicated region
        $region13: #{tpu_custom_call.1} parent=11 // pred_check
          %p137 = pneg %p73
        $region14: #{tpu_custom_call.1} parent=11 // pred_check_branch
          %139 = sbr.rel (%p137) target = $region16
        $region15: #{tpu_custom_call.1} parent=11 // pred_region
          _
        $region16: #{tpu_custom_call.1} parent=11 // pred_fallthru
          _
        // Predicated region
        $region17: #{tpu_custom_call.1} parent=11 // pred_check
          %p140 = pneg %p94
        $region18: #{tpu_custom_call.1} parent=11 // pred_check_branch
          %142 = sbr.rel (%p140) target = $region20
        $region19: #{tpu_custom_call.1} parent=11 // pred_region
          _
        $region20: #{tpu_custom_call.1} parent=11 // pred_fallthru
          _
      $region12: #{tpu_custom_call.1} parent=5 // pred_fallthru
        _
      %p143 = scmp.lt.s32.totalorder %s12, 2
      // Predicated region
      $region21: #{tpu_custom_call.1} parent=5 // pred_check
        %p144 = pneg %p143
      $region22: #{tpu_custom_call.1} parent=5 // pred_check_branch
        %146 = sbr.rel (%p144) target = $region24
      $region23: #{tpu_custom_call.1} parent=5 // pred_region
        // Predicated region
        $region25: #{tpu_custom_call.1} parent=23 // pred_check
          %p147 = pneg %p46
        $region26: #{tpu_custom_call.1} parent=23 // pred_check_branch
          %149 = sbr.rel (%p147) target = $region28
        $region27: #{tpu_custom_call.1} parent=23 // pred_region
          %s150 = smul.u32 2, %s20
          %p151 = scmp.lt.s32.totalorder %s19, 1
          %s152 = scalar_select %p151, %s19, 1
          %p153 = scmp.lt.s32.totalorder %s150, 1
          %s154 = scalar_select %p153, %s150, 1
          %s155 = smul.addr %s152, 10
          %s156 = sadd.s32 %s154, %s155
          %s157 = smul.addr %s156, 8
          %s158 = scalar_lea.vmem %s0, %s157
          %s159 = smul.u32 2, %s20
        $region28: #{tpu_custom_call.1} parent=23 // pred_fallthru
          _
      $region24: #{tpu_custom_call.1} parent=5 // pred_fallthru
        _
      %p160 = scmp.le.s32.totalorder 1, %s12
      %p161 = scmp.lt.s32.totalorder %s12, 3
      %p162 = pnand %p160, %p161
      %p163 = pneg %p162
      // Predicated region
      $region29: #{tpu_custom_call.1} parent=5 // pred_check
        _
      $region30: #{tpu_custom_call.1} parent=5 // pred_check_branch
        %165 = sbr.rel (%p162) target = $region32
      $region31: #{tpu_custom_call.1} parent=5 // pred_region
        %s166 = ssub.s32 %s12, 1
        %s167 = smul.u32 2, %s22
        %p168 = scmp.lt.s32.totalorder %s21, 1
        %s169 = scalar_select %p168, %s21, 1
        %p170 = scmp.lt.s32.totalorder %s167, 1
        %s171 = scalar_select %p170, %s167, 1
        %s172 = smul.addr %s169, 10
        %s173 = sadd.s32 %s171, %s172
        %s174 = smul.addr %s173, 8
        %s175 = scalar_lea.vmem %s0, %s174
        %p176 = pneg %p52
        %p177 = pneg %p49
        %p178 = pneg %p73
        %p179 = pneg %p70
        %p180 = pneg %p94
        %p181 = pneg %p91
        %p182 = pneg %p122
        %p183 = pneg %p119
        %s184 = sand.u32 %s109, 1
        %s185 = scalar_lea.sflag [#allocation3], %s184
        %s186 = sand.u32 %s109, 1
        %s187 = smul.addr %s186, 4
        %s188 = scalar_lea.vmem [#allocation2], %s187
        %s189 = smul.u32 2, %s22
        %p190 = scmp.lt.s32.totalorder %s21, 1
        %s191 = scalar_select %p190, %s21, 1
        %p192 = scmp.lt.s32.totalorder %s189, 1
        %s193 = scalar_select %p192, %s189, 1
        %s194 = smul.addr %s191, 10
        %s195 = sadd.s32 %s193, %s194
        %s196 = smul.addr %s195, 8
        %s197 = scalar_lea.vmem %s0, %s196
        %s198 = smul.u32 2, %s22
        %s199 = smul.u32 2, %s22
        %v200 = vld [vmem:[%s1] sm:$0x3]
        %v201 = vld [vmem:[%s197] sm:$0xff]
        %v202 = vld [vmem:[%s197 + $0x8] sm:$0xff]
        %v203 = vld [vmem:[%s197 + $0x10] sm:$0xff]
        %v204 = vld [vmem:[%s197 + $0x18] sm:$0xff]
        %v205 = vld [vmem:[%s197 + $0x20] sm:$0xff]
        %v206 = vld [vmem:[%s197 + $0x28] sm:$0xff]
        %v207 = vld [vmem:[%s197 + $0x30] sm:$0xff]
        %v208 = vld [vmem:[%s197 + $0x38] sm:$0xff]
        %v209 = vld [vmem:[%s197 + $0x40] sm:$0x7]
        %v210 = vld [vmem:[%s197 + $0x48] sm:$0x7]
        %211 = vxpose.xlu0.b32.start [1/16] %v201, 128
        %212 = vxpose.xlu0.b32.cont [2/16] %v203, 128
        %213 = vxpose.xlu0.b32.cont [3/16] %v205, 128
        %214 = vxpose.xlu0.b32.cont [4/16] %v207, 128
        %215 = vxpose.xlu0.b32.cont [5/16] %v209, 128
        %216 = vxpose.xlu0.b32.cont [6/16] 0.0, 128
        %217 = vxpose.xlu0.b32.cont [7/16] 0.0, 128
        %218 = vxpose.xlu0.b32.cont [8/16] 0.0, 128
        %219 = vxpose.xlu0.b32.cont [9/16] 0.0, 128
        %220 = vxpose.xlu0.b32.cont [10/16] 0.0, 128
        %221 = vxpose.xlu0.b32.cont [11/16] 0.0, 128
        %222 = vxpose.xlu0.b32.cont [12/16] 0.0, 128
        %223 = vxpose.xlu0.b32.cont [13/16] 0.0, 128
        %224 = vxpose.xlu0.b32.cont [14/16] 0.0, 128
        %225 = vxpose.xlu0.b32.cont [15/16] 0.0, 128
        %226 = vxpose.xlu0.b32.end [16/16] 0.0, 128
        %v227 = vpop.trf.xlu0
        %v228 = vpop.trf.xlu0
        %v229 = vpop.trf.xlu0
        %v230 = vpop.trf.xlu0
        %v231 = vpop.trf.xlu0
        %v232 = vpop.trf.xlu0
        %v233 = vpop.trf.xlu0
        %v234 = vpop.trf.xlu0
        %v235 = vpop.trf.xlu0
        %v236 = vpop.trf.xlu0
        %v237 = vpop.trf.xlu0
        %v238 = vpop.trf.xlu0
        %v239 = vpop.trf.xlu0
        %v240 = vpop.trf.xlu0
        %v241 = vpop.trf.xlu0
        %v242 = vpop.trf.xlu0
        %243 = vxpose.xlu0.b32.start [1/16] %v202, 128
        %244 = vxpose.xlu0.b32.cont [2/16] %v204, 128
        %245 = vxpose.xlu0.b32.cont [3/16] %v206, 128
        %246 = vxpose.xlu0.b32.cont [4/16] %v208, 128
        %247 = vxpose.xlu0.b32.cont [5/16] %v210, 128
        %248 = vxpose.xlu0.b32.cont [6/16] 0.0, 128
        %249 = vxpose.xlu0.b32.cont [7/16] 0.0, 128
        %250 = vxpose.xlu0.b32.cont [8/16] 0.0, 128
        %251 = vxpose.xlu0.b32.cont [9/16] 0.0, 128
        %252 = vxpose.xlu0.b32.cont [10/16] 0.0, 128
        %253 = vxpose.xlu0.b32.cont [11/16] 0.0, 128
        %254 = vxpose.xlu0.b32.cont [12/16] 0.0, 128
        %255 = vxpose.xlu0.b32.cont [13/16] 0.0, 128
        %256 = vxpose.xlu0.b32.cont [14/16] 0.0, 128
        %257 = vxpose.xlu0.b32.cont [15/16] 0.0, 128
        %258 = vxpose.xlu0.b32.end [16/16] 0.0, 128
        %v259 = vpop.trf.xlu0
        %v260 = vpop.trf.xlu0
        %v261 = vpop.trf.xlu0
        %v262 = vpop.trf.xlu0
        %v263 = vpop.trf.xlu0
        %v264 = vpop.trf.xlu0
        %v265 = vpop.trf.xlu0
        %v266 = vpop.trf.xlu0
        %v267 = vpop.trf.xlu0
        %v268 = vpop.trf.xlu0
        %v269 = vpop.trf.xlu0
        %v270 = vpop.trf.xlu0
        %v271 = vpop.trf.xlu0
        %v272 = vpop.trf.xlu0
        %v273 = vpop.trf.xlu0
        %v274 = vpop.trf.xlu0
        %vm275 = vcmask 285696
        %v277 = vsel %vm275, %v227, 0
        %v280 = vsel %vm275, %v228, 0
        %v283 = vsel %vm275, %v229, 0
        %v286 = vsel %vm275, %v230, 0
        %v289 = vsel %vm275, %v231, 0
        %v292 = vsel %vm275, %v232, 0
        %v295 = vsel %vm275, %v233, 0
        %v298 = vsel %vm275, %v234, 0
        %v301 = vsel %vm275, %v235, 0
        %v304 = vsel %vm275, %v236, 0
        %v307 = vsel %vm275, %v237, 0
        %v310 = vsel %vm275, %v238, 0
        %v313 = vsel %vm275, %v239, 0
        %v316 = vsel %vm275, %v240, 0
        %v319 = vsel %vm275, %v241, 0
        %v322 = vsel %vm275, %v242, 0
        %v325 = vsel %vm275, %v259, 0
        %v328 = vsel %vm275, %v260, 0
        %v331 = vsel %vm275, %v261, 0
        %v334 = vsel %vm275, %v262, 0
        %v337 = vsel %vm275, %v263, 0
        %v340 = vsel %vm275, %v264, 0
        %v343 = vsel %vm275, %v265, 0
        %v346 = vsel %vm275, %v266, 0
        %v349 = vsel %vm275, %v267, 0
        %v352 = vsel %vm275, %v268, 0
        %v355 = vsel %vm275, %v269, 0
        %v358 = vsel %vm275, %v270, 0
        %v361 = vsel %vm275, %v271, 0
        %v364 = vsel %vm275, %v272, 0
        %v367 = vsel %vm275, %v273, 0
        %v370 = vsel %vm275, %v274, 0
        %v373 = vsel %vm275, %v200, 0
        %375 = vmatpush.xpose.msra.mxu0 0.0
        %376 = vmatpush.xpose.msra.mxu0 0.0
        %377 = vmatpush.xpose.msra.mxu0 0.0
        %378 = vmatpush.xpose.msra.mxu0 0.0
        %379 = vmatpush.xpose.msra.mxu0 0.0
        %380 = vmatpush.xpose.msra.mxu0 0.0
        %381 = vmatpush.xpose.msra.mxu0 0.0
        %382 = vmatpush.xpose.msra.mxu0 0.0
        %383 = vmatpush.xpose.msra.mxu0 0.0
        %384 = vmatpush.xpose.msra.mxu0 0.0
        %385 = vmatpush.xpose.msra.mxu0 0.0
        %386 = vmatpush.xpose.msra.mxu0 0.0
        %387 = vmatpush.xpose.msra.mxu0 0.0
        %388 = vmatpush.xpose.msra.mxu0 0.0
        %389 = vmatpush.xpose.msra.mxu0 0.0
        %390 = vmatpush.xpose.msra.mxu0 %v373
        %391 = vmatmul.f32.gmra.mxu0 %v277
        %v392 = vpop.f32.mrf.mxu0
        %v393 = vadd.f32 0.0, %v392
        %394 = vmatmul.f32.gmra.mxu0 %v280
        %v395 = vpop.f32.mrf.mxu0
        %v396 = vadd.f32 0.0, %v395
        %397 = vmatmul.f32.gmra.mxu0 %v283
        %v398 = vpop.f32.mrf.mxu0
        %v399 = vadd.f32 0.0, %v398
        %400 = vmatmul.f32.gmra.mxu0 %v286
        %v401 = vpop.f32.mrf.mxu0
        %v402 = vadd.f32 0.0, %v401
        %403 = vmatmul.f32.gmra.mxu0 %v289
        %v404 = vpop.f32.mrf.mxu0
        %v405 = vadd.f32 0.0, %v404
        %406 = vmatmul.f32.gmra.mxu0 %v292
        %v407 = vpop.f32.mrf.mxu0
        %v408 = vadd.f32 0.0, %v407
        %409 = vmatmul.f32.gmra.mxu0 %v295
        %v410 = vpop.f32.mrf.mxu0
        %v411 = vadd.f32 0.0, %v410
        %412 = vmatmul.f32.gmra.mxu0 %v298
        %v413 = vpop.f32.mrf.mxu0
        %v414 = vadd.f32 0.0, %v413
        %415 = vmatmul.f32.gmra.mxu0 %v301
        %v416 = vpop.f32.mrf.mxu0
        %v417 = vadd.f32 0.0, %v416
        %418 = vmatmul.f32.gmra.mxu0 %v304
        %v419 = vpop.f32.mrf.mxu0
        %v420 = vadd.f32 0.0, %v419
        %421 = vmatmul.f32.gmra.mxu0 %v307
        %v422 = vpop.f32.mrf.mxu0
        %v423 = vadd.f32 0.0, %v422
        %424 = vmatmul.f32.gmra.mxu0 %v310
        %v425 = vpop.f32.mrf.mxu0
        %v426 = vadd.f32 0.0, %v425
        %427 = vmatmul.f32.gmra.mxu0 %v313
        %v428 = vpop.f32.mrf.mxu0
        %v429 = vadd.f32 0.0, %v428
        %430 = vmatmul.f32.gmra.mxu0 %v316
        %v431 = vpop.f32.mrf.mxu0
        %v432 = vadd.f32 0.0, %v431
        %433 = vmatmul.f32.gmra.mxu0 %v319
        %v434 = vpop.f32.mrf.mxu0
        %v435 = vadd.f32 0.0, %v434
        %436 = vmatmul.f32.gmra.mxu0 %v322
        %v437 = vpop.f32.mrf.mxu0
        %v438 = vadd.f32 0.0, %v437
        %439 = vmatmul.f32.gmra.mxu0 %v325
        %v440 = vpop.f32.mrf.mxu0
        %v441 = vadd.f32 0.0, %v440
        %442 = vmatmul.f32.gmra.mxu0 %v328
        %v443 = vpop.f32.mrf.mxu0
        %v444 = vadd.f32 0.0, %v443
        %445 = vmatmul.f32.gmra.mxu0 %v331
        %v446 = vpop.f32.mrf.mxu0
        %v447 = vadd.f32 0.0, %v446
        %448 = vmatmul.f32.gmra.mxu0 %v334
        %v449 = vpop.f32.mrf.mxu0
        %v450 = vadd.f32 0.0, %v449
        %451 = vmatmul.f32.gmra.mxu0 %v337
        %v452 = vpop.f32.mrf.mxu0
        %v453 = vadd.f32 0.0, %v452
        %454 = vmatmul.f32.gmra.mxu0 %v340
        %v455 = vpop.f32.mrf.mxu0
        %v456 = vadd.f32 0.0, %v455
        %457 = vmatmul.f32.gmra.mxu0 %v343
        %v458 = vpop.f32.mrf.mxu0
        %v459 = vadd.f32 0.0, %v458
        %460 = vmatmul.f32.gmra.mxu0 %v346
        %v461 = vpop.f32.mrf.mxu0
        %v462 = vadd.f32 0.0, %v461
        %463 = vmatmul.f32.gmra.mxu0 %v349
        %v464 = vpop.f32.mrf.mxu0
        %v465 = vadd.f32 0.0, %v464
        %466 = vmatmul.f32.gmra.mxu0 %v352
        %v467 = vpop.f32.mrf.mxu0
        %v468 = vadd.f32 0.0, %v467
        %469 = vmatmul.f32.gmra.mxu0 %v355
        %v470 = vpop.f32.mrf.mxu0
        %v471 = vadd.f32 0.0, %v470
        %472 = vmatmul.f32.gmra.mxu0 %v358
        %v473 = vpop.f32.mrf.mxu0
        %v474 = vadd.f32 0.0, %v473
        %475 = vmatmul.f32.gmra.mxu0 %v361
        %v476 = vpop.f32.mrf.mxu0
        %v477 = vadd.f32 0.0, %v476
        %478 = vmatmul.f32.gmra.mxu0 %v364
        %v479 = vpop.f32.mrf.mxu0
        %v480 = vadd.f32 0.0, %v479
        %481 = vmatmul.f32.gmra.mxu0 %v367
        %v482 = vpop.f32.mrf.mxu0
        %v483 = vadd.f32 0.0, %v482
        %484 = vmatmul.f32.gmra.mxu0 %v370
        %v485 = vpop.f32.mrf.mxu0
        %v486 = vadd.f32 0.0, %v485
        %487 = vdwg.mxu0
        %488 = vxpose.xlu0.b32.start [1/16] %v393, 128
        %489 = vxpose.xlu0.b32.cont [2/16] %v396, 128
        %490 = vxpose.xlu0.b32.cont [3/16] %v399, 128
        %491 = vxpose.xlu0.b32.cont [4/16] %v402, 128
        %492 = vxpose.xlu0.b32.cont [5/16] %v405, 128
        %493 = vxpose.xlu0.b32.cont [6/16] %v408, 128
        %494 = vxpose.xlu0.b32.cont [7/16] %v411, 128
        %495 = vxpose.xlu0.b32.cont [8/16] %v414, 128
        %496 = vxpose.xlu0.b32.cont [9/16] %v417, 128
        %497 = vxpose.xlu0.b32.cont [10/16] %v420, 128
        %498 = vxpose.xlu0.b32.cont [11/16] %v423, 128
        %499 = vxpose.xlu0.b32.cont [12/16] %v426, 128
        %500 = vxpose.xlu0.b32.cont [13/16] %v429, 128
        %501 = vxpose.xlu0.b32.cont [14/16] %v432, 128
        %502 = vxpose.xlu0.b32.cont [15/16] %v435, 128
        %503 = vxpose.xlu0.b32.end [16/16] %v438, 128
        %v504 = vpop.trf.xlu0
        %v505 = vpop.trf.xlu0
        %v506 = vpop.trf.xlu0
        %v507 = vpop.trf.xlu0
        %v508 = vpop.trf.xlu0
        %v509 = vpop.trf.xlu0
        %v510 = vpop.trf.xlu0
        %v511 = vpop.trf.xlu0
        %v512 = vpop.trf.xlu0
        %v513 = vpop.trf.xlu0
        %v514 = vpop.trf.xlu0
        %v515 = vpop.trf.xlu0
        %v516 = vpop.trf.xlu0
        %v517 = vpop.trf.xlu0
        %v518 = vpop.trf.xlu0
        %v519 = vpop.trf.xlu0
        %520 = vxpose.xlu0.b32.start [1/16] %v441, 128
        %521 = vxpose.xlu0.b32.cont [2/16] %v444, 128
        %522 = vxpose.xlu0.b32.cont [3/16] %v447, 128
        %523 = vxpose.xlu0.b32.cont [4/16] %v450, 128
        %524 = vxpose.xlu0.b32.cont [5/16] %v453, 128
        %525 = vxpose.xlu0.b32.cont [6/16] %v456, 128
        %526 = vxpose.xlu0.b32.cont [7/16] %v459, 128
        %527 = vxpose.xlu0.b32.cont [8/16] %v462, 128
        %528 = vxpose.xlu0.b32.cont [9/16] %v465, 128
        %529 = vxpose.xlu0.b32.cont [10/16] %v468, 128
        %530 = vxpose.xlu0.b32.cont [11/16] %v471, 128
        %531 = vxpose.xlu0.b32.cont [12/16] %v474, 128
        %532 = vxpose.xlu0.b32.cont [13/16] %v477, 128
        %533 = vxpose.xlu0.b32.cont [14/16] %v480, 128
        %534 = vxpose.xlu0.b32.cont [15/16] %v483, 128
        %535 = vxpose.xlu0.b32.end [16/16] %v486, 128
        %v536 = vpop.trf.xlu0
        %v537 = vpop.trf.xlu0
        %v538 = vpop.trf.xlu0
        %v539 = vpop.trf.xlu0
        %v540 = vpop.trf.xlu0
        %v541 = vpop.trf.xlu0
        %v542 = vpop.trf.xlu0
        %v543 = vpop.trf.xlu0
        %v544 = vpop.trf.xlu0
        %v545 = vpop.trf.xlu0
        %v546 = vpop.trf.xlu0
        %v547 = vpop.trf.xlu0
        %v548 = vpop.trf.xlu0
        %v549 = vpop.trf.xlu0
        %v550 = vpop.trf.xlu0
        %v551 = vpop.trf.xlu0
        %v552 = vld [vmem:[%s2] sm:$0x3]
        %554 = vset.pattern.permute.xlu0 0
        %555 = vperm.xlu0 %554, %v552
        %v556 = vpop.permute.xlu0 %555
        %v558 = vadd.f32 %v504, %v556
        %v559 = vadd.f32 %v536, %v556
        %vm560 = vcmp.gt.f32.partialorder %v558, 0.0
        %vm561 = vcmp.gt.f32.partialorder %v559, 0.0
        %v562 = vmul.f32 %v558, 2.9759178
        %v563 = vmul.f32 %v559, 2.9759178
        %v564 = vsel %vm560, %v558, %v562
        %v565 = vsel %vm561, %v559, %v563
        %v568 = vrot.slane %v565, 6
        %vm569 = vcmask 1041408
        %v570 = vsel %vm569, %v564, %v568
        %572 = vst [vmem:[%s188] sm:$0xf] %v570
        %s573 = sand.u32 %s109, 1
        %s574 = scalar_lea.sflag [#allocation3], %s573
        %s575 = sand.u32 %s109, 1
        %s576 = smul.addr %s575, 4
        %s577 = scalar_lea.vmem [#allocation2], %s576
        // Predicated region
        $region33: #{tpu_custom_call.1} parent=31 // pred_check
          %p578 = pneg %p119
        $region34: #{tpu_custom_call.1} parent=31 // pred_check_branch
          %580 = sbr.rel (%p578) target = $region36
        $region35: #{tpu_custom_call.1} parent=31 // pred_region
          %s581 = smul.u32 2, %s22
          %583 = vsyncadd %s574, 0
          %s584 = smul.addr %s21, 2
          %s585 = sadd.s32 %s581, %s584
          %s586 = smul.addr %s585, 2
          %s587 = scalar_lea.hbm %s3, %s586
          %s589 = sshll.u32 %s577, 4
          %s590 = int_to_ptr.vmem [resolvable:$true] %s589
          %s591 = sshll.u32 %s587, 4
          %s592 = int_to_ptr.hbm [resolvable:$true] %s591
          %594 = dma.vmem_to_hbm [thread:$0]  %s590, 64, %s592, %s574
        $region36: #{tpu_custom_call.1} parent=31 // pred_fallthru
          _
      $region32: #{tpu_custom_call.1} parent=5 // pred_fallthru
        _
      %p595 = scmp.le.s32.totalorder 2, %s12
      // Predicated region
      $region37: #{tpu_custom_call.1} parent=5 // pred_check
        %p596 = pneg %p595
      $region38: #{tpu_custom_call.1} parent=5 // pred_check_branch
        %598 = sbr.rel (%p596) target = $region40
      $region39: #{tpu_custom_call.1} parent=5 // pred_region
        %s599 = ssub.s32 %s12, 2
        // Predicated region
        $region41: #{tpu_custom_call.1} parent=39 // pred_check
          %p600 = pneg %p125
        $region42: #{tpu_custom_call.1} parent=39 // pred_check_branch
          %602 = sbr.rel (%p600) target = $region44
        $region43: #{tpu_custom_call.1} parent=39 // pred_region
          %s603 = sand.u32 %s110, 1
          %s604 = scalar_lea.sflag [#allocation3], %s603
          %s605 = sand.u32 %s110, 1
          %s606 = smul.addr %s605, 4
          %s607 = scalar_lea.vmem [#allocation2], %s606
          %609 = dma.done %s604, 64
        $region44: #{tpu_custom_call.1} parent=39 // pred_fallthru
          _
      $region40: #{tpu_custom_call.1} parent=5 // pred_fallthru
        _
    $region6: #{tpu_custom_call.1} parent=1 // loop_footer
      %s16 = sadd.s32 1, %s12
    $region7: #{tpu_custom_call.1} parent=1 // loop_footer_branch
      %11 = sbr.rel target = $region3
    $region8: #{tpu_custom_call.1} parent=1 // loop_exit
      _
    %610 = vsyncpa [#allocation3], 1
    %s611 = scalar_lea.sflag [#allocation3], 1
    %612 = vsyncpa %s611, 1

</llo_original>
